<compile_context>
chip_gen: v7x
topology: tpu7x:2x2x1
jax: 0.10.0
libtpu: 0.0.40
codegen_flags: <defaults>
</compile_context>

<pallas_src>
import jax
import jax.numpy as jnp
from jax.experimental import pallas as pl
from jax.experimental.pallas import tpu as pltpu


def _identity_copy_kernel(q_ref, o_ref):
    # Straight VMEM copy of the current tile.
    o_ref[...] = q_ref[...]


_LANES = 128
# 4096 rows * 128 lanes * 4 B = 2 MiB per f32 buffer; with in+out double
# buffering that is <= ~8 MiB, inside every chip's scoped-VMEM default.
_MAX_BLOCK_ROWS = 4096
_SINGLE_BLOCK_BYTES = 2 << 20  # whole tensor in one block if <= 2 MiB


def dummy_bias_forward(points, q, n_experts=None):
    """Faithful DummyBias.forward: identity pass-through, zero kernel launch."""
    del points, n_experts  # unused, exactly as in the PyTorch module
    return q


def dummy_bias_forward_pallas(points, q, n_experts=None):
    """Identity through an explicit Pallas kernel boundary.

    Lane-dense reshape + single-block (or large-tile) VMEM copy with the
    output aliased onto the input buffer.
    """
    del points, n_experts  # unused, exactly as in the PyTorch module
    orig_shape = q.shape
    total = q.size
    nbytes = total * q.dtype.itemsize

    # Lane-dense 2-D view: last dim = 128 lanes whenever possible.
    if total % _LANES == 0:
        q2 = q.reshape(total // _LANES, _LANES)
    else:
        # TODO(synk): very large non-128-divisible inputs take the
        # single-block path below; pad to a lane multiple if that matters.
        q2 = q.reshape(1, total)
    rows, cols = q2.shape

    single_block = (nbytes <= _SINGLE_BLOCK_BYTES) or (cols != _LANES)

    if single_block:
        # Whole tensor in one block: no grid, no per-step pipeline machinery.
        out2 = pl.pallas_call(
            _identity_copy_kernel,
            out_shape=jax.ShapeDtypeStruct((rows, cols), q2.dtype),
            in_specs=[pl.BlockSpec(memory_space=pltpu.MemorySpace.VMEM)],
            out_specs=pl.BlockSpec(memory_space=pltpu.MemorySpace.VMEM),
            input_output_aliases={0: 0},
        )(q2)
    else:
        # Large tensors: tile over rows with big lane-dense blocks; leading
        # grid axis is "parallel" so v7x's two TensorCores each copy half.
        block_rows = _MAX_BLOCK_ROWS
        grid = (pl.cdiv(rows, block_rows),)
        out2 = pl.pallas_call(
            _identity_copy_kernel,
            out_shape=jax.ShapeDtypeStruct((rows, cols), q2.dtype),
            grid_spec=pl.GridSpec(
                grid=grid,
                in_specs=[pl.BlockSpec((block_rows, cols), lambda i: (i, 0))],
                out_specs=pl.BlockSpec((block_rows, cols), lambda i: (i, 0)),
            ),
            input_output_aliases={0: 0},
            compiler_params=pltpu.CompilerParams(
                dimension_semantics=("parallel",),
            ),
        )(q2)

    return out2.reshape(orig_shape)


if __name__ == "__main__":
    key = jax.random.PRNGKey(0)
    k_pts, k_q = jax.random.split(key)

    n_experts = 4
    batch = 2
    n_points = 16

    # points: (B, N, 3) point cloud (ignored by the module)
    points = jax.random.normal(k_pts, (batch, n_points, 3), dtype=jnp.float32)
    # q: (B, n_experts, N) expert-bias logits — returned as-is
    q = jax.random.normal(k_q, (batch, n_experts, n_points), dtype=jnp.float32)

    # Preferred path: pure pass-through, no kernel launch.
    out_fast = dummy_bias_forward(points, q, n_experts)

    # Kernel-boundary path: run the Pallas copy once and block on it.
    out_kernel = jax.block_until_ready(
        dummy_bias_forward_pallas(points, q, n_experts)
    )

    assert out_kernel.shape == q.shape and out_kernel.dtype == q.dtype
    assert bool(jnp.array_equal(out_kernel, q))
    assert bool(jnp.array_equal(out_fast, q))
    print("KERNEL_OK")
</pallas_src>

<mosaic_0001>
module attributes {stable_mosaic.version = 11 : i64} {
  func.func @_identity_copy_kernel(%arg0: memref<1x128xf32, #tpu.memory_space<vmem>>, %arg1: memref<1x128xf32, #tpu.memory_space<vmem>>) attributes {dimension_semantics = [], scalar_prefetch = 0 : i64, scratch_operands = 0 : i64, tpu.core_type = #tpu.core_type<tc>} {
    %c0 = arith.constant 0 : index
    %c0_0 = arith.constant 0 : index
    %0 = vector.load %arg0[%c0, %c0_0] : memref<1x128xf32, #tpu.memory_space<vmem>>, vector<1x128xf32>
    %c0_1 = arith.constant 0 : index
    %c0_2 = arith.constant 0 : index
    %1 = vector.load %arg1[%c0_1, %c0_2] : memref<1x128xf32, #tpu.memory_space<vmem>>, vector<1x128xf32>
    tpu.vector_store %arg1[%c0_1, %c0_2], %0 {strides = array<i32>} : memref<1x128xf32, #tpu.memory_space<vmem>>, vector<1x128xf32>,
    return
  }
}

</mosaic_0001>

<llo_original>
// kernel: tpu_custom_call.1
$region0: #{tpu_custom_call.1}
  #allocation0 [shape = 'u32[]', space=smem, size = 0x4, offset = 0x4, fixed_abs, tag = 'smem constant byte address 0x4 - core index']
  #allocation1 [shape = 'u32[144,128]{1,0:T(1,128)}', space=vmem, size = 0x12000, scoped, tag = 'internal scratch']
  %s0 = inlined_call_operand.hbm [shape: f32[1,128], index: 0, kind: input, shape index: {}, may-alias: {0,1}]
  %s1 = inlined_call_operand.hbm [shape: f32[1,128], index: 1, kind: output, shape index: {}, may-alias: {0,1}]
  %s2 = sld [smem:[#allocation0]]
  $region18: #{tpu_custom_call.1} parent=0
    _
  %s4 = ssub.s32 1, %s2
  %s5 = scalar_select 0, %s4, %s2
  $region1: #{tpu_custom_call.1} parent=0
    #allocation2 [shape = 'u8[512]{0}', space=vmem, size = 0x400, scoped, tag = 'input window, operand 0, single buffered']
    #allocation3 [shape = 's32[1]{0}', space=sflag, size = 0x4, scoped, tag = 'scoped memory for tpu_custom_call.1']
    #allocation4 [shape = 's32[1]{0}', space=sflag, size = 0x4, scoped, tag = 'scoped memory for tpu_custom_call.1']
    #allocation5 [shape = 'u8[512]{0}', space=vmem, size = 0x400, scoped, tag = 'output window, operand 0, single buffered']
    %6 = vsyncpa [#allocation3], 0
    %7 = vsyncpa [#allocation4], 0
    // Predicated region
    $region2: #{tpu_custom_call.1} parent=1 // pred_check
      _
    $region3: #{tpu_custom_call.1} parent=1 // pred_check_branch
      %9 = sbr.rel (0) target = $region5
    $region4: #{tpu_custom_call.1} parent=1 // pred_region
      %s11 = ssub.s32 16, 16
      %12 = vsyncadd [#allocation3], %s11
      %s14 = sshll.u32 [#allocation2], 4
      %s15 = int_to_ptr.vmem [resolvable:$true] %s14
      %17 = dma.hbm_to_vmem [thread:$0]  %s0, 16, %s15, [#allocation3]
    $region5: #{tpu_custom_call.1} parent=1 // pred_fallthru
      _
    // Predicated region
    $region6: #{tpu_custom_call.1} parent=1 // pred_check
      _
    $region7: #{tpu_custom_call.1} parent=1 // pred_check_branch
      %19 = sbr.rel (0) target = $region9
    $region8: #{tpu_custom_call.1} parent=1 // pred_region
      %20 = dma.done [#allocation3], 16
    $region9: #{tpu_custom_call.1} parent=1 // pred_fallthru
      _
    %v21 = vld [vmem:[#allocation2] sm:$0x1]
    %22 = vst [vmem:[#allocation5] sm:$0x1] %v21
    // Predicated region
    $region10: #{tpu_custom_call.1} parent=1 // pred_check
      _
    $region11: #{tpu_custom_call.1} parent=1 // pred_check_branch
      %24 = sbr.rel (0) target = $region13
    $region12: #{tpu_custom_call.1} parent=1 // pred_region
      %s26 = ssub.s32 16, 16
      %27 = vsyncadd [#allocation4], %s26
      %s29 = sshll.u32 [#allocation5], 4
      %s30 = int_to_ptr.vmem [resolvable:$true] %s29
      %32 = dma.vmem_to_hbm [thread:$0]  %s30, 16, %s1, [#allocation4]
    $region13: #{tpu_custom_call.1} parent=1 // pred_fallthru
      _
    // Predicated region
    $region14: #{tpu_custom_call.1} parent=1 // pred_check
      _
    $region15: #{tpu_custom_call.1} parent=1 // pred_check_branch
      %34 = sbr.rel (0) target = $region17
    $region16: #{tpu_custom_call.1} parent=1 // pred_region
      %35 = dma.done [#allocation4], 16
    $region17: #{tpu_custom_call.1} parent=1 // pred_fallthru
      _
    %36 = vsyncpa [#allocation3], 1
    %37 = vsyncpa [#allocation4], 1

</llo_original>
